<compile_context>
chip_gen: v6e
topology: v6e:2x2x1
jax: 0.10.0
libtpu: 0.0.40
codegen_flags: <defaults>
</compile_context>

<pallas_src>
import jax
import jax.numpy as jnp
from jax.experimental import pallas as pl
from jax.experimental.pallas import tpu as pltpu

IN_FEATURES = 100
OUT_FEATURES = 200

NO_GRID_MAX = 256  # below this, one straight-line no-grid call is cheapest


def linear_add_kernel(x_ref, w_ref, b_ref, other_ref, o_ref):
    # x_ref:     (m, 100)   VMEM
    # w_ref:     (100, 200) VMEM (pre-transposed weight, resident across steps)
    # b_ref:     (1, 200)   VMEM
    # other_ref: (m, 200)   VMEM
    # o_ref:     (m, 200)   VMEM
    acc = jnp.dot(x_ref[...], w_ref[...], preferred_element_type=jnp.float32)
    o_ref[...] = (acc + b_ref[...] + other_ref[...]).astype(o_ref.dtype)


def prepare_params(weight, bias):
    """One-time prep: transpose weight to (in, out); bias as a (1, out) row."""
    w_t = weight.T.astype(jnp.float32)                  # (100, 200)
    b_row = bias.astype(jnp.float32).reshape(1, OUT_FEATURES)
    return w_t, b_row


def _cost(m):
    return pl.CostEstimate(
        flops=2 * m * IN_FEATURES * OUT_FEATURES,
        transcendentals=0,
        bytes_accessed=4 * (m * IN_FEATURES
                            + IN_FEATURES * OUT_FEATURES
                            + OUT_FEATURES
                            + 2 * m * OUT_FEATURES),
    )


def _pick_tile(m):
    if m >= 8192:
        return 1024
    if m >= 2048:
        return 512
    return 256


@jax.jit
def model_forward(x, w_t, b_row, other):
    """Computes Linear(x) + other, matching the PyTorch Model.forward.

    x:     (M, 100) float32
    w_t:   (100, 200) float32   (from prepare_params)
    b_row: (1, 200) float32     (from prepare_params)
    other: (M, 200) float32     (the undefined global `other`)
    """
    x = x.astype(jnp.float32)
    other = other.astype(jnp.float32)
    M = x.shape[0]
    vmem = pltpu.MemorySpace.VMEM

    if M <= NO_GRID_MAX:
        # Tiny problem: whole arrays in VMEM, single kernel invocation.
        return pl.pallas_call(
            linear_add_kernel,
            out_shape=jax.ShapeDtypeStruct((M, OUT_FEATURES), jnp.float32),
            in_specs=[pl.BlockSpec(memory_space=vmem)] * 4,
            out_specs=pl.BlockSpec(memory_space=vmem),
            cost_estimate=_cost(M),
        )(x, w_t, b_row, other)

    # Gridded path: row tiles, weight/bias resident, ragged tail masked by
    # Pallas (no jnp.pad), row axis marked "parallel" for megacore (v7x).
    tile_m = _pick_tile(M)
    grid_m = pl.cdiv(M, tile_m)
    return pl.pallas_call(
        linear_add_kernel,
        out_shape=jax.ShapeDtypeStruct((M, OUT_FEATURES), jnp.float32),
        grid=(grid_m,),
        in_specs=[
            pl.BlockSpec((tile_m, IN_FEATURES), lambda i: (i, 0)),
            pl.BlockSpec((IN_FEATURES, OUT_FEATURES), lambda i: (0, 0)),
            pl.BlockSpec((1, OUT_FEATURES), lambda i: (0, 0)),
            pl.BlockSpec((tile_m, OUT_FEATURES), lambda i: (i, 0)),
        ],
        out_specs=pl.BlockSpec((tile_m, OUT_FEATURES), lambda i: (i, 0)),
        compiler_params=pltpu.CompilerParams(
            dimension_semantics=("parallel",)),
        cost_estimate=_cost(M),
    )(x, w_t, b_row, other)


if __name__ == "__main__":
    key = jax.random.PRNGKey(0)
    k_x, k_w, k_b, k_o, k_x2, k_o2 = jax.random.split(key, 6)

    # Deterministic parameter init (PyTorch-style uniform bounds, synthetic).
    bound = 1.0 / (IN_FEATURES ** 0.5)
    weight = jax.random.uniform(
        k_w, (OUT_FEATURES, IN_FEATURES), jnp.float32, -bound, bound
    )
    bias = jax.random.uniform(k_b, (OUT_FEATURES,), jnp.float32, -bound, bound)
    w_t, b_row = prepare_params(weight, bias)

    # `other` is an undefined global in the original module; model it as an
    # explicit input tensor broadcast-compatible with the linear output.
    # TODO(synk): `other` has no definition in the source module; treated as input.

    # 1) Small batch -> no-grid path.
    M1 = 8
    x1 = jax.random.normal(k_x, (M1, IN_FEATURES), jnp.float32)
    other1 = jax.random.normal(k_o, (M1, OUT_FEATURES), jnp.float32)
    out1 = jax.block_until_ready(model_forward(x1, w_t, b_row, other1))
    ref1 = x1 @ weight.T + bias + other1
    assert out1.shape == (M1, OUT_FEATURES)
    assert jnp.allclose(out1, ref1, atol=1e-4, rtol=1e-4)

    # 2) Moderate batch with a ragged tail -> gridded path (partial last block).
    M2 = 640
    x2 = jax.random.normal(k_x2, (M2, IN_FEATURES), jnp.float32)
    other2 = jax.random.normal(k_o2, (M2, OUT_FEATURES), jnp.float32)
    out2 = jax.block_until_ready(model_forward(x2, w_t, b_row, other2))
    ref2 = x2 @ weight.T + bias + other2
    assert out2.shape == (M2, OUT_FEATURES)
    assert jnp.allclose(out2, ref2, atol=1e-4, rtol=1e-4)

    print("KERNEL_OK")
</pallas_src>

<mosaic_0001>
module attributes {stable_mosaic.version = 11 : i64} {
  func.func @linear_add_kernel(%arg0: memref<8x100xf32, #tpu.memory_space<vmem>>, %arg1: memref<100x200xf32, #tpu.memory_space<vmem>>, %arg2: memref<1x200xf32, #tpu.memory_space<vmem>>, %arg3: memref<8x200xf32, #tpu.memory_space<vmem>>, %arg4: memref<8x200xf32, #tpu.memory_space<vmem>>) attributes {dimension_semantics = [], scalar_prefetch = 0 : i64, scratch_operands = 0 : i64, tpu.core_type = #tpu.core_type<tc>} {
    %c0 = arith.constant 0 : index
    %c0_0 = arith.constant 0 : index
    %0 = vector.load %arg0[%c0, %c0_0] : memref<8x100xf32, #tpu.memory_space<vmem>>, vector<8x100xf32>
    %c0_1 = arith.constant 0 : index
    %c0_2 = arith.constant 0 : index
    %1 = vector.load %arg1[%c0_1, %c0_2] : memref<100x200xf32, #tpu.memory_space<vmem>>, vector<100x200xf32>
    %cst = arith.constant dense<0.000000e+00> : vector<8x200xf32>
    %2 = tpu.matmul %0, %1, %cst {dimension_numbers = #tpu.dot_dimension_numbers<[1], [0], [0], [1], [0, 0, 1, 1], [], []>} : vector<8x100xf32>, vector<100x200xf32>, vector<8x200xf32> -> vector<8x200xf32>
    %c0_3 = arith.constant 0 : index
    %c0_4 = arith.constant 0 : index
    %3 = vector.load %arg2[%c0_3, %c0_4] : memref<1x200xf32, #tpu.memory_space<vmem>>, vector<1x200xf32>
    %4 = vector.broadcast %3 : vector<1x200xf32> to vector<8x200xf32>
    %5 = arith.addf %2, %4 : vector<8x200xf32>
    %c0_5 = arith.constant 0 : index
    %c0_6 = arith.constant 0 : index
    %6 = vector.load %arg3[%c0_5, %c0_6] : memref<8x200xf32, #tpu.memory_space<vmem>>, vector<8x200xf32>
    %7 = arith.addf %5, %6 : vector<8x200xf32>
    %c0_7 = arith.constant 0 : index
    %c0_8 = arith.constant 0 : index
    %8 = vector.load %arg4[%c0_7, %c0_8] : memref<8x200xf32, #tpu.memory_space<vmem>>, vector<8x200xf32>
    tpu.vector_store %arg4[%c0_7, %c0_8], %7 {strides = array<i32>} : memref<8x200xf32, #tpu.memory_space<vmem>>, vector<8x200xf32>,
    return
  }
}

</mosaic_0001>

<llo_original>
// kernel: model_forward.1
$region0: #{model_forward.1}
  #allocation0 [shape = 'u32[]', space=smem, size = 0x4, offset = 0x4, fixed_abs, tag = 'smem constant byte address 0x4 - core index']
  #allocation1 [shape = 'u32[144,128]{1,0:T(1,128)}', space=vmem, size = 0x12000, scoped, tag = 'internal scratch']
  %s0 = inlined_call_operand.vmem [shape: f32[8,100], index: 0, kind: input, shape index: {}]
  %s1 = inlined_call_operand.vmem [shape: f32[100,200], index: 1, kind: input, shape index: {}]
  %s2 = inlined_call_operand.vmem [shape: f32[1,200], index: 2, kind: input, shape index: {}]
  %s3 = inlined_call_operand.vmem [shape: f32[8,200], index: 3, kind: input, shape index: {}]
  %s4 = inlined_call_operand.hbm [shape: f32[8,200], index: 4, kind: output, shape index: {}]
  %s5 = sld [smem:[#allocation0]]
  $region26: #{model_forward.1} parent=0
    _
  %s7 = ssub.s32 1, %s5
  %s8 = scalar_select 0, %s7, %s5
  $region1: #{model_forward.1} parent=0
    #allocation2 [shape = 'u8[8192]{0}', space=vmem, size = 0x2000, scoped, tag = 'output window, operand 0, single buffered']
    #allocation3 [shape = 's32[1]{0}', space=sflag, size = 0x4, scoped, tag = 'scoped memory for model_forward.1']
    %9 = vsyncpa [#allocation3], 0
    // Predicated region
    $region2: #{model_forward.1} parent=1 // pred_check
      _
    $region3: #{model_forward.1} parent=1 // pred_check_branch
      %11 = sbr.rel (0) target = $region5
    $region4: #{model_forward.1} parent=1 // pred_region
      _
    $region5: #{model_forward.1} parent=1 // pred_fallthru
      _
    // Predicated region
    $region6: #{model_forward.1} parent=1 // pred_check
      _
    $region7: #{model_forward.1} parent=1 // pred_check_branch
      %13 = sbr.rel (0) target = $region9
    $region8: #{model_forward.1} parent=1 // pred_region
      _
    $region9: #{model_forward.1} parent=1 // pred_fallthru
      _
    // Predicated region
    $region10: #{model_forward.1} parent=1 // pred_check
      _
    $region11: #{model_forward.1} parent=1 // pred_check_branch
      %15 = sbr.rel (0) target = $region13
    $region12: #{model_forward.1} parent=1 // pred_region
      _
    $region13: #{model_forward.1} parent=1 // pred_fallthru
      _
    // Predicated region
    $region14: #{model_forward.1} parent=1 // pred_check
      _
    $region15: #{model_forward.1} parent=1 // pred_check_branch
      %17 = sbr.rel (0) target = $region17
    $region16: #{model_forward.1} parent=1 // pred_region
      _
    $region17: #{model_forward.1} parent=1 // pred_fallthru
      _
    %v18 = vld [vmem:[%s0] sm:$0xff]
    %v19 = vld [vmem:[%s1] sm:$0xff]
    %v20 = vld [vmem:[%s1 + $0x8] sm:$0xff]
    %v21 = vld [vmem:[%s1 + $0x10] sm:$0xff]
    %v22 = vld [vmem:[%s1 + $0x18] sm:$0xff]
    %v23 = vld [vmem:[%s1 + $0x20] sm:$0xff]
    %v24 = vld [vmem:[%s1 + $0x28] sm:$0xff]
    %v25 = vld [vmem:[%s1 + $0x30] sm:$0xff]
    %v26 = vld [vmem:[%s1 + $0x38] sm:$0xff]
    %v27 = vld [vmem:[%s1 + $0x40] sm:$0xff]
    %v28 = vld [vmem:[%s1 + $0x48] sm:$0xff]
    %v29 = vld [vmem:[%s1 + $0x50] sm:$0xff]
    %v30 = vld [vmem:[%s1 + $0x58] sm:$0xff]
    %v31 = vld [vmem:[%s1 + $0x60] sm:$0xff]
    %v32 = vld [vmem:[%s1 + $0x68] sm:$0xff]
    %v33 = vld [vmem:[%s1 + $0x70] sm:$0xff]
    %v34 = vld [vmem:[%s1 + $0x78] sm:$0xff]
    %v35 = vld [vmem:[%s1 + $0x80] sm:$0xff]
    %v36 = vld [vmem:[%s1 + $0x88] sm:$0xff]
    %v37 = vld [vmem:[%s1 + $0x90] sm:$0xff]
    %v38 = vld [vmem:[%s1 + $0x98] sm:$0xff]
    %v39 = vld [vmem:[%s1 + $0xa0] sm:$0xff]
    %v40 = vld [vmem:[%s1 + $0xa8] sm:$0xff]
    %v41 = vld [vmem:[%s1 + $0xb0] sm:$0xff]
    %v42 = vld [vmem:[%s1 + $0xb8] sm:$0xff]
    %v43 = vld [vmem:[%s1 + $0xc0] sm:$0xf]
    %v44 = vld [vmem:[%s1 + $0xc8] sm:$0xf]
    %v45 = vld [vmem:[%s2] sm:$0x3]
    %v47 = vlaneseq
    %v48 = vshrl.u32 %v47, 7
    %v49 = vsub.s32 0, %v48
    %v50 = vrot.slane %v45, %v49
    %v51 = vlaneseq
    %v52 = vshrl.u32 %v51, 7
    %v53 = vsub.s32 1, %v52
    %v54 = vrot.slane %v45, %v53
    %vm57 = vcmask 818176
    %v59 = vsel %vm57, %v18, 0
    %vm61 = vcmask 1043456
    %v63 = vsel %vm61, %v43, 0
    %v66 = vsel %vm61, %v44, 0
    %68 = vmatprep.subr.mxu0 0.0
    %69 = vmatpush1.msra.mxu0 0.0
    %70 = vmatprep.subr.mxu0 0.0
    %71 = vmatpush1.msra.mxu0 0.0
    %72 = vmatprep.subr.mxu0 0.0
    %73 = vmatpush1.msra.mxu0 0.0
    %74 = vmatprep.subr.mxu0 %v66
    %75 = vmatpush1.msra.mxu0 %v63
    %76 = vmatprep.subr.mxu0 %v42
    %77 = vmatpush1.msra.mxu0 %v41
    %78 = vmatprep.subr.mxu0 %v40
    %79 = vmatpush1.msra.mxu0 %v39
    %80 = vmatprep.subr.mxu0 %v38
    %81 = vmatpush1.msra.mxu0 %v37
    %82 = vmatprep.subr.mxu0 %v36
    %83 = vmatpush1.msra.mxu0 %v35
    %84 = vmatprep.subr.mxu0 %v34
    %85 = vmatpush1.msra.mxu0 %v33
    %86 = vmatprep.subr.mxu0 %v32
    %87 = vmatpush1.msra.mxu0 %v31
    %88 = vmatprep.subr.mxu0 %v30
    %89 = vmatpush1.msra.mxu0 %v29
    %90 = vmatprep.subr.mxu0 %v28
    %91 = vmatpush1.msra.mxu0 %v27
    %92 = vmatprep.subr.mxu0 %v26
    %93 = vmatpush1.msra.mxu0 %v25
    %94 = vmatprep.subr.mxu0 %v24
    %95 = vmatpush1.msra.mxu0 %v23
    %96 = vmatprep.subr.mxu0 %v22
    %97 = vmatpush1.msra.mxu0 %v21
    %98 = vmatprep.subr.mxu0 %v20
    %99 = vmatpush1.msra.mxu0 %v19
    %100 = vmatprep.subr.mxu0 0.0
    %101 = vmatpush2.msra.mxu0 0.0
    %102 = vmatprep.subr.mxu0 0.0
    %103 = vmatpush2.msra.mxu0 0.0
    %104 = vmatprep.subr.mxu0 0.0
    %105 = vmatpush2.msra.mxu0 0.0
    %106 = vmatprep.subr.mxu0 0.0
    %107 = vmatpush2.msra.mxu0 0.0
    %108 = vmatprep.subr.mxu0 0.0
    %109 = vmatpush2.msra.mxu0 0.0
    %110 = vmatprep.subr.mxu0 0.0
    %111 = vmatpush2.msra.mxu0 0.0
    %112 = vmatprep.subr.mxu0 0.0
    %113 = vmatpush2.msra.mxu0 0.0
    %114 = vmatprep.subr.mxu0 0.0
    %115 = vmatpush2.msra.mxu0 0.0
    %116 = vmatprep.subr.mxu0 0.0
    %117 = vmatpush2.msra.mxu0 0.0
    %118 = vmatprep.subr.mxu0 0.0
    %119 = vmatpush2.msra.mxu0 0.0
    %120 = vmatprep.subr.mxu0 0.0
    %121 = vmatpush2.msra.mxu0 0.0
    %122 = vmatprep.subr.mxu0 0.0
    %123 = vmatpush2.msra.mxu0 0.0
    %124 = vmatprep.subr.mxu0 0.0
    %125 = vmatpush2.msra.mxu0 0.0
    %126 = vmatprep.subr.mxu0 0.0
    %127 = vmatpush2.msra.mxu0 0.0
    %128 = vmatprep.subr.mxu0 0.0
    %129 = vmatpush2.msra.mxu0 0.0
    %130 = vmatprep.subr.mxu0 0.0
    %131 = vmatpush2.msra.mxu0 0.0
    %132 = vmatprep.mubr.f32.mxu0 0.0
    %133 = vmatmul.mubr.f32.gmra.mxu0 %v59
    %v134 = vpop.f32.mrf.mxu0
    %v135 = vadd.f32 %v50, %v134
    %v136 = vpop.f32.mrf.mxu0
    %v137 = vadd.f32 %v54, %v136
    %138 = vdwg.mxu0
    %v139 = vld [vmem:[%s3] sm:$0xff]
    %v140 = vld [vmem:[%s3 + $0x8] sm:$0xff]
    %v141 = vadd.f32 %v135, %v139
    %v142 = vadd.f32 %v137, %v140
    %143 = vst [vmem:[#allocation2] sm:$0xff] %v141
    %vm144 = vcmask 588800
    %145 = vst.msk [vmem:[#allocation2 + $0x8] sm:$0xff] %vm144, %v142
    // Predicated region
    $region18: #{model_forward.1} parent=1 // pred_check
      _
    $region19: #{model_forward.1} parent=1 // pred_check_branch
      %147 = sbr.rel (0) target = $region21
    $region20: #{model_forward.1} parent=1 // pred_region
      %s149 = ssub.s32 256, 256
      %150 = vsyncadd [#allocation3], %s149
      %s152 = sshll.u32 [#allocation2], 4
      %s153 = int_to_ptr.vmem [resolvable:$true] %s152
      %155 = dma.vmem_to_hbm [thread:$0]  %s153, 256, %s4, [#allocation3]
    $region21: #{model_forward.1} parent=1 // pred_fallthru
      _
    // Predicated region
    $region22: #{model_forward.1} parent=1 // pred_check
      _
    $region23: #{model_forward.1} parent=1 // pred_check_branch
      %157 = sbr.rel (0) target = $region25
    $region24: #{model_forward.1} parent=1 // pred_region
      %158 = dma.done [#allocation3], 256
    $region25: #{model_forward.1} parent=1 // pred_fallthru
      _
    %159 = vsyncpa [#allocation3], 1

</llo_original>
